<compile_context>
chip_gen: v7x
topology: tpu7x:2x2x1
jax: 0.10.0
libtpu: 0.0.40
codegen_flags: <defaults>
</compile_context>

<pallas_src>
import functools
import math

import jax
import jax.numpy as jnp
from jax.experimental import pallas as pl
from jax.experimental.pallas import tpu as pltpu


def _group_sort_kernel(x_ref, o_ref, *, group_size):
    """Sort every aligned run of `group_size` lanes ascending (NaNs last)."""
    g = group_size
    x = x_ref[...]                       # (tm, lanes) block, lanes % g == 0
    lanes = x.shape[-1]
    lane_axis = x.ndim - 1
    nan_aware = jnp.issubdtype(x.dtype, jnp.floating)

    # Row-invariant within-group lane position, shape (1, lanes): broadcasts
    # along sublanes for free and never creates block-sized mask temporaries.
    pos = jax.lax.broadcasted_iota(jnp.int32, (1, lanes), 1) % g

    # Parity-dependent participation masks, hoisted out of the pass loop.
    masks = []
    for par in range(min(2, g - 1)):
        lower = ((pos & 1) == par) & (pos < g - 1)   # pairs with lane+1
        upper = ((pos & 1) != par) & (pos > 0)       # pairs with lane-1
        full = (par == 0) and (g % 2 == 0)           # every lane participates
        masks.append((lower, upper, full))

    # Odd-even transposition network: g passes of neighbour compare-exchange.
    # Rolls land on the XLU slot, compare/select on the VPU; no cross-lane
    # reductions, no MXU.
    # TODO(synk): for large groups (g >= 8, e.g. lnets FullSort) a bitonic
    # network would cut the pass count to O(log^2 g); odd-even kept for clarity.
    for p in range(g):
        par = p & 1
        if par >= g - 1:                 # only g == 2, par == 1: no pairs
            continue
        lower, upper, full = masks[par]
        right = pltpu.roll(x, lanes - 1, lane_axis)   # value from lane+1
        # Single pair decision, evaluated at the lower lane of each pair.
        # NaN is treated as +inf so it sorts last (torch.sort semantics).
        if nan_aware:
            swap = (right < x) | (x != x)
        else:
            swap = right < x
        lo = jnp.where(swap, right, x)                # pair min (valid at lower lane)
        hi = jnp.where(swap, x, right)                # pair max (valid at lower lane)
        hi_up = pltpu.roll(hi, 1, lane_axis)          # pair max moved to upper lane
        if full:
            x = jnp.where(lower, lo, hi_up)
        else:
            x = jnp.where(lower, lo, jnp.where(upper, hi_up, x))

    o_ref[...] = x


def _default_block_bytes():
    """~4 MiB blocks by default (safe inside v7x's 64 MiB per-core VMEM);
    ~8 MiB on chips that report >=100 MiB VMEM (v5e/v6e have 128 MiB)."""
    try:
        info = pltpu.get_tpu_info()
        if getattr(info, "vmem_capacity_bytes", 0) >= (100 << 20):
            return 8 << 20
    except Exception:
        pass
    return 4 << 20


def _sublane_multiple(dtype):
    """Dtype-native sublane tile: 8 for 4-byte, 16 for 2-byte, 32 for 1-byte."""
    return max(8, 32 // dtype.itemsize)


def _pick_block_rows(rows, row_bytes, target_block_bytes, sub):
    """Rows per block: blocks of <= ~target bytes, rows a multiple of `sub`,
    and an even number of >=2 grid steps once the payload is big enough so
    both v7x TensorCores get balanced work on the 'parallel' grid axis."""
    if rows <= sub:
        return rows
    total = rows * row_bytes
    steps = max(1, pl.cdiv(total, max(target_block_bytes, 1)))
    if steps == 1 and total >= (512 << 10):
        steps = 2                        # one block would leave a v7x core idle
    if steps > 1 and steps % 2:
        steps += 1                       # even step count -> balanced split
    tm = pl.cdiv(pl.cdiv(rows, steps), sub) * sub
    return min(tm, rows)


def group_sort_pallas(x, num_units, axis=-1, *, target_block_bytes=None):
    """Pallas implementation of lnets GroupSort.forward."""
    ndim = x.ndim
    ax = axis + ndim if axis < 0 else axis
    if ax != ndim - 1:
        # Grouping is by channel index, so moving the channel axis last is
        # equivalent; only this non-default path pays for transposes.
        y = group_sort_pallas(jnp.moveaxis(x, ax, -1), num_units,
                              target_block_bytes=target_block_bytes)
        return jnp.moveaxis(y, -1, ax)

    orig_shape = x.shape
    c = orig_shape[-1]
    if c % num_units:
        raise ValueError(
            "number of features({}) is not a multiple of num_units({})".format(
                c, num_units))
    g = c // num_units
    n = x.size
    if g == 1 or n == 0:
        return x                         # size-1 groups: sorting is identity

    if target_block_bytes is None:
        target_block_bytes = _default_block_bytes()

    # Lane-dense view with zero transposes: flat row-major order is already a
    # concatenation of length-g groups, so any (rows, lanes) reshape with
    # lanes % g == 0 keeps every group inside one row at lane % g positions.
    # lanes = lcm(g, 128): single-vreg rolls for power-of-two group sizes and
    # unmasked, lane-dense stores in all cases.
    lanes = g * 128 // math.gcd(g, 128)
    flat = x.reshape(-1)
    n_pad = pl.cdiv(n, lanes) * lanes
    if n_pad != n:
        # Rare ragged path (n not a multiple of lcm(g,128)): pad whole dummy
        # groups at the tail; they sort independently and are sliced off.
        # TODO(synk): pad+slice costs an extra HBM pass; an aligned-prefix plus
        # tiny-tail split would keep this path at exactly 2 passes too.
        flat = jnp.pad(flat, (0, n_pad - n))
    rows = n_pad // lanes
    x2 = flat.reshape(rows, lanes)

    sub = _sublane_multiple(x.dtype)
    row_bytes = lanes * x.dtype.itemsize
    tm = _pick_block_rows(rows, row_bytes, target_block_bytes, sub)
    grid = (pl.cdiv(rows, tm),)
    # ~12x the target block comfortably covers double-buffered in/out blocks
    # plus the per-pass block-sized value temporaries, while staying inside
    # v7x's 64 MiB physical VMEM (and well inside v5e/v6e's 128 MiB).
    vmem_limit = int(max(48 << 20, min(96 << 20, 12 * target_block_bytes)))

    out = pl.pallas_call(
        functools.partial(_group_sort_kernel, group_size=g),
        out_shape=jax.ShapeDtypeStruct((rows, lanes), x.dtype),
        grid=grid,
        in_specs=[pl.BlockSpec((tm, lanes), lambda i: (i, 0))],
        out_specs=pl.BlockSpec((tm, lanes), lambda i: (i, 0)),
        compiler_params=pltpu.CompilerParams(
            # Rows are independent -> shard the grid across v7x's 2 TensorCores.
            dimension_semantics=("parallel",),
            vmem_limit_bytes=vmem_limit,
        ),
    )(x2)

    out = out.reshape(-1)
    if n_pad != n:
        out = out[:n]
    return out.reshape(orig_shape)


class GroupSort:
    """Drop-in forward for the lnets GroupSort nn.Module (values only)."""

    def __init__(self, num_units, axis=-1):
        self.num_units = num_units
        self.axis = axis

    def __call__(self, x):
        return group_sort_pallas(x, self.num_units, self.axis)


# ----------------------------- reference / checks -----------------------------

def _group_sort_ref(x, num_units, axis=-1):
    ax = axis % x.ndim
    c = x.shape[ax]
    g = c // num_units
    shape = x.shape[:ax] + (num_units, g) + x.shape[ax + 1:]
    return jnp.sort(x.reshape(shape), axis=ax + 1).reshape(x.shape)


def _check_group_sorted(x, num_units, axis=-1):
    ax = axis % x.ndim
    c = x.shape[ax]
    g = c // num_units
    shape = x.shape[:ax] + (num_units, g) + x.shape[ax + 1:]
    diffs = jnp.diff(x.reshape(shape), axis=ax + 1)
    return int(jnp.sum(diffs < 0)) == 0


if __name__ == "__main__":
    key = jax.random.PRNGKey(0)
    k1, k2, k3, k4, k5, k6, k7 = jax.random.split(key, 7)

    # 1) Dense activations, group size 4, via the module-style wrapper.
    x1 = jax.random.normal(k1, (8, 32), dtype=jnp.float32)
    y1 = jax.block_until_ready(GroupSort(num_units=8)(x1))
    assert y1.shape == x1.shape and y1.dtype == x1.dtype
    assert jnp.array_equal(y1, _group_sort_ref(x1, 8)), "case 1 mismatch"
    assert _check_group_sorted(y1, 8), "GroupSort failed. "

    # 2) 3-D input, group size 2 (MaxMin).
    x2 = jax.random.normal(k2, (2, 4, 16), dtype=jnp.float32)
    y2 = jax.block_until_ready(group_sort_pallas(x2, num_units=8))
    assert jnp.array_equal(y2, _group_sort_ref(x2, 8)), "case 2 mismatch"
    assert _check_group_sorted(y2, 8), "GroupSort failed. "

    # 3) Ragged grid (rows not a multiple of block rows) via forced tiny blocks.
    x3 = jax.random.normal(k3, (100, 32), dtype=jnp.float32)
    y3 = jax.block_until_ready(
        group_sort_pallas(x3, num_units=8, target_block_bytes=4096))
    assert jnp.array_equal(y3, _group_sort_ref(x3, 8)), "case 3 (ragged) mismatch"

    # 4) NaN handling: NaNs land at the tail of their group, finite order kept.
    x4 = x1.at[0, 5].set(jnp.nan).at[3, 17].set(jnp.nan)
    y4 = jax.block_until_ready(group_sort_pallas(x4, num_units=8))
    g_in = x4.reshape(8, 8, 4)
    g_out = y4.reshape(8, 8, 4)
    assert bool(jnp.array_equal(
        jnp.sort(jnp.where(jnp.isnan(g_in), jnp.inf, g_in), axis=-1),
        jnp.where(jnp.isnan(g_out), jnp.inf, g_out))), "case 4 (NaN) mismatch"

    # 5) Odd group size (g=5), exercising the tail-padding fallback path.
    x5 = jax.random.normal(k4, (3, 20), dtype=jnp.float32)
    y5 = jax.block_until_ready(group_sort_pallas(x5, num_units=4))
    assert jnp.array_equal(y5, _group_sort_ref(x5, 4)), "case 5 (g=5) mismatch"

    # 6) bf16 dtype, group size 2 (16-row sublane tile rounding path).
    x6 = jax.random.normal(k5, (8, 32), dtype=jnp.bfloat16)
    y6 = jax.block_until_ready(group_sort_pallas(x6, num_units=16))
    assert y6.dtype == jnp.bfloat16
    assert jnp.array_equal(y6, _group_sort_ref(x6, 16)), "case 6 (bf16) mismatch"

    # 7) Non-default axis (axis=1), handled by moving the channel axis last.
    x7 = jax.random.normal(k6, (2, 12, 5), dtype=jnp.float32)
    y7 = jax.block_until_ready(group_sort_pallas(x7, num_units=3, axis=1))
    assert jnp.array_equal(y7, _group_sort_ref(x7, 3, axis=1)), "case 7 (axis=1) mismatch"

    # 8) ~512 KiB payload: exercises the forced >=2-step (megacore-split) grid.
    x8 = jax.random.normal(k7, (256, 512), dtype=jnp.float32)
    y8 = jax.block_until_ready(group_sort_pallas(x8, num_units=128))
    assert jnp.array_equal(y8, _group_sort_ref(x8, 128)), "case 8 (multi-block) mismatch"
    assert _check_group_sorted(y8, 128), "GroupSort failed. "

    print("KERNEL_OK")
</pallas_src>

<mosaic_0001>
module attributes {stable_mosaic.version = 11 : i64} {
  func.func @_group_sort_kernel(%arg0: i32, %arg1: memref<2x128xf32, #tpu.memory_space<vmem>>, %arg2: memref<2x128xf32, #tpu.memory_space<vmem>>) attributes {dimension_semantics = [#tpu.dimension_semantics<parallel>], iteration_bounds = array<i64: 1>, scalar_prefetch = 0 : i64, scratch_operands = 0 : i64, tpu.core_type = #tpu.core_type<tc>, window_params = [{transform_indices = @transform_0, window_bounds = array<i64: 2, 128>}, {transform_indices = @transform_1, window_bounds = array<i64: 2, 128>}]} {
    %c0 = arith.constant 0 : index
    %c0_0 = arith.constant 0 : index
    %0 = vector.load %arg1[%c0, %c0_0] : memref<2x128xf32, #tpu.memory_space<vmem>>, vector<2x128xf32>
    %1 = tpu.iota {dimensions = array<i32: 1>} : vector<1x128xi32>
    %c4_i32 = arith.constant 4 : i32
    %c0_i32 = arith.constant 0 : i32
    %2 = arith.cmpi eq, %c4_i32, %c0_i32 : i32
    %c1_i32 = arith.constant 1 : i32
    %3 = arith.select %2, %c1_i32, %c4_i32 : i32
    %4 = vector.broadcast %3 : i32 to vector<1x128xi32>
    %5 = arith.remsi %1, %4 : vector<1x128xi32>
    %c0_i32_1 = arith.constant 0 : i32
    %6 = vector.broadcast %c0_i32_1 : i32 to vector<1x128xi32>
    %7 = arith.cmpi ne, %5, %6 : vector<1x128xi32>
    %c0_i32_2 = arith.constant 0 : i32
    %8 = vector.broadcast %c0_i32_2 : i32 to vector<1x128xi32>
    %9 = arith.cmpi slt, %5, %8 : vector<1x128xi32>
    %c0_i32_3 = arith.constant 0 : i32
    %10 = arith.cmpi slt, %3, %c0_i32_3 : i32
    %11 = vector.broadcast %10 : i1 to vector<1x128xi1>
    %12 = vector.broadcast %11 : vector<1x128xi1> to vector<1x128xi1>
    %13 = arith.xori %9, %12 : vector<1x128xi1>
    %14 = arith.andi %13, %7 : vector<1x128xi1>
    %15 = vector.broadcast %3 : i32 to vector<1x128xi32>
    %16 = arith.addi %5, %15 : vector<1x128xi32>
    %17 = arith.select %14, %16, %5 : vector<1x128xi1>, vector<1x128xi32>
    %c1_i32_4 = arith.constant 1 : i32
    %18 = vector.broadcast %c1_i32_4 : i32 to vector<1x128xi32>
    %19 = arith.andi %17, %18 : vector<1x128xi32>
    %c0_i32_5 = arith.constant 0 : i32
    %20 = vector.broadcast %c0_i32_5 : i32 to vector<1x128xi32>
    %21 = arith.cmpi eq, %19, %20 : vector<1x128xi32>
    %c3_i32 = arith.constant 3 : i32
    %22 = vector.broadcast %c3_i32 : i32 to vector<1x128xi32>
    %23 = arith.cmpi slt, %17, %22 : vector<1x128xi32>
    %24 = arith.andi %21, %23 : vector<1x128xi1>
    %c1_i32_6 = arith.constant 1 : i32
    %25 = vector.broadcast %c1_i32_6 : i32 to vector<1x128xi32>
    %26 = arith.andi %17, %25 : vector<1x128xi32>
    %c1_i32_7 = arith.constant 1 : i32
    %27 = vector.broadcast %c1_i32_7 : i32 to vector<1x128xi32>
    %28 = arith.cmpi eq, %26, %27 : vector<1x128xi32>
    %c3_i32_8 = arith.constant 3 : i32
    %29 = vector.broadcast %c3_i32_8 : i32 to vector<1x128xi32>
    %30 = arith.cmpi slt, %17, %29 : vector<1x128xi32>
    %31 = arith.andi %28, %30 : vector<1x128xi1>
    %c1_i32_9 = arith.constant 1 : i32
    %32 = vector.broadcast %c1_i32_9 : i32 to vector<1x128xi32>
    %33 = arith.andi %17, %32 : vector<1x128xi32>
    %c1_i32_10 = arith.constant 1 : i32
    %34 = vector.broadcast %c1_i32_10 : i32 to vector<1x128xi32>
    %35 = arith.cmpi ne, %33, %34 : vector<1x128xi32>
    %c0_i32_11 = arith.constant 0 : i32
    %36 = vector.broadcast %c0_i32_11 : i32 to vector<1x128xi32>
    %37 = arith.cmpi sgt, %17, %36 : vector<1x128xi32>
    %38 = arith.andi %35, %37 : vector<1x128xi1>
    %c127_i32 = arith.constant 127 : i32
    %39 = tpu.dynamic_rotate %0 by %c127_i32 dim 1 : vector<2x128xf32>, i32 -> vector<2x128xf32>
    %40 = arith.cmpf olt, %39, %0 : vector<2x128xf32>
    %41 = arith.cmpf one, %0, %0 : vector<2x128xf32>
    %42 = arith.ori %40, %41 : vector<2x128xi1>
    %43 = arith.select %42, %39, %0 : vector<2x128xi1>, vector<2x128xf32>
    %44 = arith.select %42, %0, %39 : vector<2x128xi1>, vector<2x128xf32>
    %c1_i32_12 = arith.constant 1 : i32
    %45 = tpu.dynamic_rotate %44 by %c1_i32_12 dim 1 : vector<2x128xf32>, i32 -> vector<2x128xf32>
    %46 = vector.shape_cast %24 : vector<1x128xi1> to vector<1x128xi1>
    %47 = vector.broadcast %46 : vector<1x128xi1> to vector<2x128xi1>
    %48 = arith.select %47, %43, %45 : vector<2x128xi1>, vector<2x128xf32>
    %c127_i32_13 = arith.constant 127 : i32
    %49 = tpu.dynamic_rotate %48 by %c127_i32_13 dim 1 : vector<2x128xf32>, i32 -> vector<2x128xf32>
    %50 = arith.cmpf olt, %49, %48 : vector<2x128xf32>
    %51 = arith.cmpf one, %48, %48 : vector<2x128xf32>
    %52 = arith.ori %50, %51 : vector<2x128xi1>
    %53 = arith.select %52, %49, %48 : vector<2x128xi1>, vector<2x128xf32>
    %54 = arith.select %52, %48, %49 : vector<2x128xi1>, vector<2x128xf32>
    %c1_i32_14 = arith.constant 1 : i32
    %55 = tpu.dynamic_rotate %54 by %c1_i32_14 dim 1 : vector<2x128xf32>, i32 -> vector<2x128xf32>
    %56 = vector.shape_cast %38 : vector<1x128xi1> to vector<1x128xi1>
    %57 = vector.broadcast %56 : vector<1x128xi1> to vector<2x128xi1>
    %58 = arith.select %57, %55, %48 : vector<2x128xi1>, vector<2x128xf32>
    %59 = vector.shape_cast %31 : vector<1x128xi1> to vector<1x128xi1>
    %60 = vector.broadcast %59 : vector<1x128xi1> to vector<2x128xi1>
    %61 = arith.select %60, %53, %58 : vector<2x128xi1>, vector<2x128xf32>
    %c127_i32_15 = arith.constant 127 : i32
    %62 = tpu.dynamic_rotate %61 by %c127_i32_15 dim 1 : vector<2x128xf32>, i32 -> vector<2x128xf32>
    %63 = arith.cmpf olt, %62, %61 : vector<2x128xf32>
    %64 = arith.cmpf one, %61, %61 : vector<2x128xf32>
    %65 = arith.ori %63, %64 : vector<2x128xi1>
    %66 = arith.select %65, %62, %61 : vector<2x128xi1>, vector<2x128xf32>
    %67 = arith.select %65, %61, %62 : vector<2x128xi1>, vector<2x128xf32>
    %c1_i32_16 = arith.constant 1 : i32
    %68 = tpu.dynamic_rotate %67 by %c1_i32_16 dim 1 : vector<2x128xf32>, i32 -> vector<2x128xf32>
    %69 = vector.shape_cast %24 : vector<1x128xi1> to vector<1x128xi1>
    %70 = vector.broadcast %69 : vector<1x128xi1> to vector<2x128xi1>
    %71 = arith.select %70, %66, %68 : vector<2x128xi1>, vector<2x128xf32>
    %c127_i32_17 = arith.constant 127 : i32
    %72 = tpu.dynamic_rotate %71 by %c127_i32_17 dim 1 : vector<2x128xf32>, i32 -> vector<2x128xf32>
    %73 = arith.cmpf olt, %72, %71 : vector<2x128xf32>
    %74 = arith.cmpf one, %71, %71 : vector<2x128xf32>
    %75 = arith.ori %73, %74 : vector<2x128xi1>
    %76 = arith.select %75, %72, %71 : vector<2x128xi1>, vector<2x128xf32>
    %77 = arith.select %75, %71, %72 : vector<2x128xi1>, vector<2x128xf32>
    %c1_i32_18 = arith.constant 1 : i32
    %78 = tpu.dynamic_rotate %77 by %c1_i32_18 dim 1 : vector<2x128xf32>, i32 -> vector<2x128xf32>
    %79 = vector.shape_cast %38 : vector<1x128xi1> to vector<1x128xi1>
    %80 = vector.broadcast %79 : vector<1x128xi1> to vector<2x128xi1>
    %81 = arith.select %80, %78, %71 : vector<2x128xi1>, vector<2x128xf32>
    %82 = vector.shape_cast %31 : vector<1x128xi1> to vector<1x128xi1>
    %83 = vector.broadcast %82 : vector<1x128xi1> to vector<2x128xi1>
    %84 = arith.select %83, %76, %81 : vector<2x128xi1>, vector<2x128xf32>
    %c0_19 = arith.constant 0 : index
    %c0_20 = arith.constant 0 : index
    %85 = vector.load %arg2[%c0_19, %c0_20] : memref<2x128xf32, #tpu.memory_space<vmem>>, vector<2x128xf32>
    tpu.vector_store %arg2[%c0_19, %c0_20], %84 {strides = array<i32>} : memref<2x128xf32, #tpu.memory_space<vmem>>, vector<2x128xf32>,
    return
  }
  func.func @transform_0(%arg0: i32) -> (i32, i32) {
    %c0_i32 = arith.constant 0 : i32
    %c0_i32_0 = arith.constant 0 : i32
    return %arg0, %c0_i32 : i32, i32
  }
  func.func @transform_1(%arg0: i32) -> (i32, i32) {
    %c0_i32 = arith.constant 0 : i32
    %c0_i32_0 = arith.constant 0 : i32
    return %arg0, %c0_i32 : i32, i32
  }
}

</mosaic_0001>

<llo_original>
// kernel: tpu_custom_call.1
$region0: #{tpu_custom_call.1}
  #allocation0 [shape = 'u32[]', space=smem, size = 0x4, offset = 0x4, fixed_abs, tag = 'smem constant byte address 0x4 - core index']
  #allocation1 [shape = 'u32[144,128]{1,0:T(1,128)}', space=vmem, size = 0x12000, scoped, tag = 'internal scratch']
  %s0 = inlined_call_operand.hbm [shape: f32[2,128], index: 0, kind: input, shape index: {}]
  %s1 = inlined_call_operand.hbm [shape: f32[2,128], index: 1, kind: output, shape index: {}]
  %s2 = sld [smem:[#allocation0]]
  $region18: #{tpu_custom_call.1} parent=0
    _
  %s4 = ssub.s32 1, %s2
  %s5 = scalar_select 0, %s4, %s2
  $region1: #{tpu_custom_call.1} parent=0
    #allocation2 [shape = 'u8[1024]{0}', space=vmem, size = 0x400, scoped, tag = 'input window, operand 0, single buffered']
    #allocation3 [shape = 's32[1]{0}', space=sflag, size = 0x4, scoped, tag = 'scoped memory for tpu_custom_call.1']
    #allocation4 [shape = 's32[1]{0}', space=sflag, size = 0x4, scoped, tag = 'scoped memory for tpu_custom_call.1']
    #allocation5 [shape = 'u8[1024]{0}', space=vmem, size = 0x400, scoped, tag = 'output window, operand 0, single buffered']
    %6 = vsyncpa [#allocation3], 0
    %7 = vsyncpa [#allocation4], 0
    // Predicated region
    $region2: #{tpu_custom_call.1} parent=1 // pred_check
      _
    $region3: #{tpu_custom_call.1} parent=1 // pred_check_branch
      %9 = sbr.rel (0) target = $region5
    $region4: #{tpu_custom_call.1} parent=1 // pred_region
      %s11 = ssub.s32 32, 32
      %12 = vsyncadd [#allocation3], %s11
      %s14 = sshll.u32 [#allocation2], 4
      %s15 = int_to_ptr.vmem [resolvable:$true] %s14
      %17 = dma.hbm_to_vmem [thread:$0]  %s0, 32, %s15, [#allocation3]
    $region5: #{tpu_custom_call.1} parent=1 // pred_fallthru
      _
    // Predicated region
    $region6: #{tpu_custom_call.1} parent=1 // pred_check
      _
    $region7: #{tpu_custom_call.1} parent=1 // pred_check_branch
      %19 = sbr.rel (0) target = $region9
    $region8: #{tpu_custom_call.1} parent=1 // pred_region
      %20 = dma.done [#allocation3], 32
    $region9: #{tpu_custom_call.1} parent=1 // pred_fallthru
      _
    %v21 = vld [vmem:[#allocation2] sm:$0x3]
    %v22 = vlaneseq
    %v23 = vand.u32 %v22, 127
    %vm24 = vcmp.lt.s32.totalorder %v23, 0
    %v25 = vsub.s32 0, %v23
    %v26 = vsel %vm24, %v25, %v23
    %v27 = vshrl.u32 %v26, 2
    %v28 = vand.u32 %v26, 3
    %v29 = vsub.s32 0, %v28
    %v30 = vsel %vm24, %v29, %v28
    %vm31 = vcmp.ne.s32.totalorder %v30, 0
    %vm32 = vcmp.lt.s32.totalorder %v30, 0
    %vm33 = vmand %vm32, %vm31
    %v34 = vadd.s32 %v30, 4
    %v35 = vsel %vm33, %v34, %v30
    %v36 = vand.u32 %v35, 1
    %vm37 = vcmp.eq.s32.totalorder %v36, 0
    %vm38 = vcmp.lt.s32.totalorder %v35, 3
    %vm39 = vmand %vm37, %vm38
    %vm40 = vcmp.eq.s32.totalorder %v36, 1
    %vm41 = vmand %vm40, %vm38
    %vm42 = vcmp.ne.s32.totalorder %v36, 1
    %vm43 = vcmp.gt.s32.totalorder %v35, 0
    %vm44 = vmand %vm42, %vm43
    %45 = vrot.lane.b32.xlu0 %v21, 127
    %v46 = vpop.permute.xlu0 %45
    %vm47 = vcmp.lt.f32.partialorder %v46, %v21
    %vm48 = vcmp.ne.f32.partialorder %v21, %v21
    %vm49 = vmor %vm47, %vm48
    %v50 = vsel %vm49, %v46, %v21
    %v51 = vsel %vm49, %v21, %v46
    %52 = vrot.lane.b32.xlu0 %v51, 1
    %v53 = vpop.permute.xlu0 %52
    %v54 = vsel %vm39, 1, 0
    %vm55 = vcmp.eq.s32.totalorder %v54, 1
    %v56 = vsel %vm55, %v50, %v53
    %57 = vrot.lane.b32.xlu0 %v56, 127
    %v58 = vpop.permute.xlu0 %57
    %vm59 = vcmp.lt.f32.partialorder %v58, %v56
    %vm60 = vcmp.ne.f32.partialorder %v56, %v56
    %vm61 = vmor %vm59, %vm60
    %v62 = vsel %vm61, %v58, %v56
    %v63 = vsel %vm61, %v56, %v58
    %64 = vrot.lane.b32.xlu0 %v63, 1
    %v65 = vpop.permute.xlu0 %64
    %v66 = vsel %vm44, 1, 0
    %vm67 = vcmp.eq.s32.totalorder %v66, 1
    %v68 = vsel %vm67, %v65, %v56
    %v69 = vsel %vm41, 1, 0
    %vm70 = vcmp.eq.s32.totalorder %v69, 1
    %v71 = vsel %vm70, %v62, %v68
    %72 = vrot.lane.b32.xlu0 %v71, 127
    %v73 = vpop.permute.xlu0 %72
    %vm74 = vcmp.lt.f32.partialorder %v73, %v71
    %vm75 = vcmp.ne.f32.partialorder %v71, %v71
    %vm76 = vmor %vm74, %vm75
    %v77 = vsel %vm76, %v73, %v71
    %v78 = vsel %vm76, %v71, %v73
    %79 = vrot.lane.b32.xlu0 %v78, 1
    %v80 = vpop.permute.xlu0 %79
    %v81 = vsel %vm55, %v77, %v80
    %82 = vrot.lane.b32.xlu0 %v81, 127
    %v83 = vpop.permute.xlu0 %82
    %vm84 = vcmp.lt.f32.partialorder %v83, %v81
    %vm85 = vcmp.ne.f32.partialorder %v81, %v81
    %vm86 = vmor %vm84, %vm85
    %v87 = vsel %vm86, %v83, %v81
    %v88 = vsel %vm86, %v81, %v83
    %89 = vrot.lane.b32.xlu0 %v88, 1
    %v90 = vpop.permute.xlu0 %89
    %v91 = vsel %vm67, %v90, %v81
    %v92 = vsel %vm70, %v87, %v91
    %93 = vst [vmem:[#allocation5] sm:$0x3] %v92
    // Predicated region
    $region10: #{tpu_custom_call.1} parent=1 // pred_check
      _
    $region11: #{tpu_custom_call.1} parent=1 // pred_check_branch
      %95 = sbr.rel (0) target = $region13
    $region12: #{tpu_custom_call.1} parent=1 // pred_region
      %s97 = ssub.s32 32, 32
      %98 = vsyncadd [#allocation4], %s97
      %s100 = sshll.u32 [#allocation5], 4
      %s101 = int_to_ptr.vmem [resolvable:$true] %s100
      %103 = dma.vmem_to_hbm [thread:$0]  %s101, 32, %s1, [#allocation4]
    $region13: #{tpu_custom_call.1} parent=1 // pred_fallthru
      _
    // Predicated region
    $region14: #{tpu_custom_call.1} parent=1 // pred_check
      _
    $region15: #{tpu_custom_call.1} parent=1 // pred_check_branch
      %105 = sbr.rel (0) target = $region17
    $region16: #{tpu_custom_call.1} parent=1 // pred_region
      %106 = dma.done [#allocation4], 32
    $region17: #{tpu_custom_call.1} parent=1 // pred_fallthru
      _
    %107 = vsyncpa [#allocation3], 1
    %108 = vsyncpa [#allocation4], 1

</llo_original>
